<compile_context>
chip_gen: v7x
topology: tpu7x:2x2x1
jax: 0.10.0
libtpu: 0.0.40
codegen_flags: <defaults>
</compile_context>

<pallas_src>
import functools

import jax
import jax.numpy as jnp
from jax.experimental import pallas as pl
from jax.experimental.pallas import tpu as pltpu

INPUT_SIZE = 5
LATENT_DIM = 2
H1 = 32
H2 = 16

XE_W = INPUT_SIZE + LATENT_DIM          # total activation input rows  (7)
OUT_W = INPUT_SIZE + 2 * LATENT_DIM     # total activation output rows (9)

COMPUTE_DTYPE = jnp.bfloat16            # MXU operand dtype (f32 accumulation)

# ---- packed parameter slab (feature-major / pre-transposed), f32 -------------
#   rows = out_features of each layer (every block starts on an 8-row boundary)
#   cols 0:fan_in = weight (out, in); col BIAS_COL = bias column (out,)
SLAB_COLS = 40           # 32 weight lanes (max fan-in) + bias col @32, padded to mult of 8
BIAS_COL = 32
R_E1 = 0                 # w_e1^T (32, 5)
R_E2 = 32                # w_e2^T (16, 32)
R_ML = 48                # fused [w_mu; w_lv]^T (4, 16)
R_D1 = 56                # w_d1^T (16, 2)
R_D2 = 72                # w_d2^T (32, 16)
R_D3 = 104               # w_d3^T (5, 32)
SLAB_ROWS = 112


def _round_up(x, m):
    return ((x + m - 1) // m) * m


def _vae_kernel(x_ref, eps_ref, w_ref, recon_ref, mu_ref, logvar_ref):
    """Feature-major fused VAE forward. x_ref: (5, bt), eps_ref: (2, bt)."""
    cdt = COMPUTE_DTYPE

    def layer(act, row, fan_in, fan_out, relu):
        # Static ref slices (zero-cost views); weight cast to bf16 for the MXU.
        w = w_ref[row:row + fan_out, 0:fan_in].astype(cdt)
        b = w_ref[row:row + fan_out, BIAS_COL:BIAS_COL + 1]          # (fan_out, 1) f32
        h = jnp.dot(w, act, preferred_element_type=jnp.float32) + b   # lane-broadcast bias
        if relu:
            h = jnp.maximum(h, 0.0)
        return h

    # ---- encoder ----
    x = x_ref[...].astype(cdt)                                        # (5, bt)
    h1 = layer(x, R_E1, INPUT_SIZE, H1, True).astype(cdt)             # (32, bt)
    h2 = layer(h1, R_E2, H1, H2, True).astype(cdt)                    # (16, bt)

    # ---- fused latent heads: one matmul -> [mu ; logvar] ----
    ml = layer(h2, R_ML, H2, 2 * LATENT_DIM, False)                   # (4, bt) f32
    mu = ml[0:LATENT_DIM, :]
    logvar = ml[LATENT_DIM:2 * LATENT_DIM, :]

    # ---- reparameterization: z = mu + eps * exp(0.5 * logvar) ----
    z = mu + eps_ref[...] * jnp.exp(0.5 * logvar)                     # (2, bt) f32

    # ---- decoder ----
    d1 = layer(z.astype(cdt), R_D1, LATENT_DIM, H2, True).astype(cdt)  # (16, bt)
    d2 = layer(d1, R_D2, H2, H1, True).astype(cdt)                     # (32, bt)
    recon = layer(d2, R_D3, H1, INPUT_SIZE, False)                     # (5, bt) f32

    # ---- lane-dense full-block stores (unmasked) ----
    recon_ref[...] = recon.astype(recon_ref.dtype)
    mu_ref[...] = mu.astype(mu_ref.dtype)
    logvar_ref[...] = logvar.astype(logvar_ref.dtype)


@functools.partial(jax.jit, static_argnames=("b_tile", "core_parallel"))
def vae_forward_t(x_t, eps_t, w_slab, b_tile=2048, core_parallel=False):
    """Feature-major VAE forward (zero-overhead entry point).

    x_t:    (INPUT_SIZE, B) float32
    eps_t:  (LATENT_DIM, B) float32 standard-normal noise
    w_slab: (SLAB_ROWS, SLAB_COLS) packed parameter slab from pack_params()
    Returns (recon_t (5,B), mu_t (2,B), logvar_t (2,B)) feature-major.
    """
    B = x_t.shape[1]
    # Batch tile: multiple of 128 (lane width), never trusted raw from the caller.
    bt = max(128, _round_up(min(b_tile, B), 128))
    Bp = _round_up(B, bt)
    if Bp != B:
        x_t = jnp.pad(x_t, ((0, 0), (0, Bp - B)))
        eps_t = jnp.pad(eps_t, ((0, 0), (0, Bp - B)))

    flops_per_col = 2 * (INPUT_SIZE * H1 + H1 * H2 + H2 * 2 * LATENT_DIM
                         + LATENT_DIM * H2 + H2 * H1 + H1 * INPUT_SIZE)
    cost = pl.CostEstimate(
        flops=Bp * flops_per_col,
        transcendentals=Bp * LATENT_DIM,
        bytes_accessed=(Bp * (XE_W + OUT_W) + SLAB_ROWS * SLAB_COLS) * 4,
    )

    # core_parallel=True splits the batch grid axis across v7x's 2 TensorCores.
    sem = pltpu.CORE_PARALLEL if core_parallel else pltpu.PARALLEL

    recon_t, mu_t, logvar_t = pl.pallas_call(
        _vae_kernel,
        out_shape=(
            jax.ShapeDtypeStruct((INPUT_SIZE, Bp), jnp.float32),
            jax.ShapeDtypeStruct((LATENT_DIM, Bp), jnp.float32),
            jax.ShapeDtypeStruct((LATENT_DIM, Bp), jnp.float32),
        ),
        grid=(Bp // bt,),
        in_specs=[
            pl.BlockSpec((INPUT_SIZE, bt), lambda i: (0, i)),            # x, tiled over batch
            pl.BlockSpec((LATENT_DIM, bt), lambda i: (0, i)),            # eps, tiled over batch
            pl.BlockSpec((SLAB_ROWS, SLAB_COLS), lambda i: (0, 0)),      # weights, resident
        ],
        out_specs=(
            pl.BlockSpec((INPUT_SIZE, bt), lambda i: (0, i)),
            pl.BlockSpec((LATENT_DIM, bt), lambda i: (0, i)),
            pl.BlockSpec((LATENT_DIM, bt), lambda i: (0, i)),
        ),
        compiler_params=pltpu.CompilerParams(dimension_semantics=(sem,)),
        cost_estimate=cost,
    )(x_t, eps_t, w_slab)

    if Bp != B:
        recon_t = recon_t[:, :B]
        mu_t = mu_t[:, :B]
        logvar_t = logvar_t[:, :B]
    return recon_t, mu_t, logvar_t


@functools.partial(jax.jit, static_argnames=("b_tile", "core_parallel"))
def vae_forward(x, eps, w_slab, b_tile=2048, core_parallel=False):
    """PyTorch-semantics convenience wrapper: batch-major in, batch-major out.

    x: (B, INPUT_SIZE), eps: (B, LATENT_DIM). For maximum throughput keep data
    feature-major end-to-end and call vae_forward_t directly.
    """
    recon_t, mu_t, logvar_t = vae_forward_t(
        x.T, eps.T, w_slab, b_tile=b_tile, core_parallel=core_parallel)
    return recon_t.T, mu_t.T, logvar_t.T


def init_params(key):
    """Deterministic init matching PyTorch nn.Linear shapes.

    Weights in math layout (in_features, out_features); biases (1, out_features).
    """
    dims = {
        "e1": (INPUT_SIZE, H1),
        "e2": (H1, H2),
        "mu": (H2, LATENT_DIM),
        "lv": (H2, LATENT_DIM),
        "d1": (LATENT_DIM, H2),
        "d2": (H2, H1),
        "d3": (H1, INPUT_SIZE),
    }
    params = {}
    for name, (fan_in, fan_out) in dims.items():
        key, kw, kb = jax.random.split(key, 3)
        bound = 1.0 / jnp.sqrt(fan_in)
        params[f"w_{name}"] = jax.random.uniform(
            kw, (fan_in, fan_out), jnp.float32, -bound, bound)
        params[f"b_{name}"] = jax.random.uniform(
            kb, (1, fan_out), jnp.float32, -bound, bound)
    return params


def pack_params(params):
    """Pack all weights/biases (mu & logvar heads fused) into one pre-transposed slab."""
    w_ml = jnp.concatenate([params["w_mu"], params["w_lv"]], axis=1)   # (16, 4)
    b_ml = jnp.concatenate([params["b_mu"], params["b_lv"]], axis=1)   # (1, 4)
    entries = [
        (R_E1, params["w_e1"], params["b_e1"]),
        (R_E2, params["w_e2"], params["b_e2"]),
        (R_ML, w_ml, b_ml),
        (R_D1, params["w_d1"], params["b_d1"]),
        (R_D2, params["w_d2"], params["b_d2"]),
        (R_D3, params["w_d3"], params["b_d3"]),
    ]
    slab = jnp.zeros((SLAB_ROWS, SLAB_COLS), jnp.float32)
    for row, w, b in entries:
        fan_in, fan_out = w.shape
        slab = slab.at[row:row + fan_out, 0:fan_in].set(w.T.astype(jnp.float32))
        slab = slab.at[row:row + fan_out, BIAS_COL].set(b[0].astype(jnp.float32))
    return slab


def vae_forward_ref(x, eps, params):
    """Pure-JAX f32 reference of the same forward pass (correctness check)."""
    h1 = jax.nn.relu(x @ params["w_e1"] + params["b_e1"])
    h2 = jax.nn.relu(h1 @ params["w_e2"] + params["b_e2"])
    mu = h2 @ params["w_mu"] + params["b_mu"]
    logvar = h2 @ params["w_lv"] + params["b_lv"]
    z = mu + eps * jnp.exp(0.5 * logvar)
    d1 = jax.nn.relu(z @ params["w_d1"] + params["b_d1"])
    d2 = jax.nn.relu(d1 @ params["w_d2"] + params["b_d2"])
    recon = d2 @ params["w_d3"] + params["b_d3"]
    return recon, mu, logvar


if __name__ == "__main__":
    key = jax.random.PRNGKey(0)
    k_params, k_x, k_eps, k_x2, k_eps2 = jax.random.split(key, 5)

    params = init_params(k_params)
    w_slab = pack_params(params)

    # bf16 MXU operands (f32 accumulation) -> not bit-exact vs. the f32 reference.
    TOL = dict(atol=5e-2, rtol=5e-2)

    # Small batch: single 128-wide grid step (batch padded 24 -> 128 on the lane axis).
    B = 24
    x = jax.random.normal(k_x, (B, INPUT_SIZE), jnp.float32)
    eps = jax.random.normal(k_eps, (B, LATENT_DIM), jnp.float32)  # torch.randn_like(std)
    recon, mu, logvar = vae_forward(x, eps, w_slab, b_tile=256)
    jax.block_until_ready((recon, mu, logvar))

    r_ref, mu_ref, lv_ref = vae_forward_ref(x, eps, params)
    assert recon.shape == (B, INPUT_SIZE) and mu.shape == (B, LATENT_DIM)
    assert jnp.allclose(recon, r_ref, **TOL)
    assert jnp.allclose(mu, mu_ref, **TOL)
    assert jnp.allclose(logvar, lv_ref, **TOL)

    # Larger batch exercising the multi-step batch grid + resident weight slab + padding.
    B2 = 300
    x2 = jax.random.normal(k_x2, (B2, INPUT_SIZE), jnp.float32)
    eps2 = jax.random.normal(k_eps2, (B2, LATENT_DIM), jnp.float32)
    recon2, mu2, logvar2 = vae_forward(x2, eps2, w_slab, b_tile=128)
    jax.block_until_ready((recon2, mu2, logvar2))

    r2_ref, mu2_ref, lv2_ref = vae_forward_ref(x2, eps2, params)
    assert jnp.allclose(recon2, r2_ref, **TOL)
    assert jnp.allclose(mu2, mu2_ref, **TOL)
    assert jnp.allclose(logvar2, lv2_ref, **TOL)

    print("KERNEL_OK")
</pallas_src>

<mosaic_0001>
module attributes {stable_mosaic.version = 11 : i64} {
  func.func @_vae_kernel(%arg0: i32, %arg1: memref<5x128xf32, #tpu.memory_space<vmem>>, %arg2: memref<2x128xf32, #tpu.memory_space<vmem>>, %arg3: memref<112x40xf32, #tpu.memory_space<vmem>>, %arg4: memref<5x128xf32, #tpu.memory_space<vmem>>, %arg5: memref<2x128xf32, #tpu.memory_space<vmem>>, %arg6: memref<2x128xf32, #tpu.memory_space<vmem>>) attributes {dimension_semantics = [#tpu.dimension_semantics<parallel>], iteration_bounds = array<i64: 1>, scalar_prefetch = 0 : i64, scratch_operands = 0 : i64, tpu.core_type = #tpu.core_type<tc>, window_params = [{transform_indices = @transform_0, window_bounds = array<i64: 5, 128>}, {transform_indices = @transform_1, window_bounds = array<i64: 2, 128>}, {pipeline_mode = #tpu.pipeline_mode<synchronous>, transform_indices = @transform_2, window_bounds = array<i64: 112, 40>}, {transform_indices = @transform_3, window_bounds = array<i64: 5, 128>}, {transform_indices = @transform_4, window_bounds = array<i64: 2, 128>}, {transform_indices = @transform_5, window_bounds = array<i64: 2, 128>}]} {
    %c0 = arith.constant 0 : index
    %c0_0 = arith.constant 0 : index
    %0 = vector.load %arg1[%c0, %c0_0] : memref<5x128xf32, #tpu.memory_space<vmem>>, vector<5x128xf32>
    %1 = arith.truncf %0 : vector<5x128xf32> to vector<5x128xbf16>
    %c0_1 = arith.constant 0 : index
    %c0_2 = arith.constant 0 : index
    %2 = vector.load %arg3[%c0_1, %c0_2] : memref<112x40xf32, #tpu.memory_space<vmem>>, vector<32x5xf32>
    %3 = arith.truncf %2 : vector<32x5xf32> to vector<32x5xbf16>
    %c0_3 = arith.constant 0 : index
    %c32 = arith.constant 32 : index
    %4 = vector.load %arg3[%c0_3, %c32] : memref<112x40xf32, #tpu.memory_space<vmem>>, vector<32x1xf32>
    %cst = arith.constant dense<0.000000e+00> : vector<32x128xf32>
    %5 = tpu.matmul %3, %1, %cst {dimension_numbers = #tpu.dot_dimension_numbers<[1], [0], [0], [1], [0, 0, 1, 1], [], []>} : vector<32x5xbf16>, vector<5x128xbf16>, vector<32x128xf32> -> vector<32x128xf32>
    %6 = vector.broadcast %4 : vector<32x1xf32> to vector<32x128xf32>
    %7 = arith.addf %5, %6 : vector<32x128xf32>
    %cst_4 = arith.constant 0.000000e+00 : f32
    %8 = vector.broadcast %cst_4 : f32 to vector<32x128xf32>
    %9 = arith.maximumf %7, %8 : vector<32x128xf32>
    %10 = arith.truncf %9 : vector<32x128xf32> to vector<32x128xbf16>
    %c32_5 = arith.constant 32 : index
    %c0_6 = arith.constant 0 : index
    %11 = vector.load %arg3[%c32_5, %c0_6] : memref<112x40xf32, #tpu.memory_space<vmem>>, vector<16x32xf32>
    %12 = arith.truncf %11 : vector<16x32xf32> to vector<16x32xbf16>
    %c32_7 = arith.constant 32 : index
    %c32_8 = arith.constant 32 : index
    %13 = vector.load %arg3[%c32_7, %c32_8] : memref<112x40xf32, #tpu.memory_space<vmem>>, vector<16x1xf32>
    %cst_9 = arith.constant dense<0.000000e+00> : vector<16x128xf32>
    %14 = tpu.matmul %12, %10, %cst_9 {dimension_numbers = #tpu.dot_dimension_numbers<[1], [0], [0], [1], [0, 0, 1, 1], [], []>} : vector<16x32xbf16>, vector<32x128xbf16>, vector<16x128xf32> -> vector<16x128xf32>
    %15 = vector.broadcast %13 : vector<16x1xf32> to vector<16x128xf32>
    %16 = arith.addf %14, %15 : vector<16x128xf32>
    %cst_10 = arith.constant 0.000000e+00 : f32
    %17 = vector.broadcast %cst_10 : f32 to vector<16x128xf32>
    %18 = arith.maximumf %16, %17 : vector<16x128xf32>
    %19 = arith.truncf %18 : vector<16x128xf32> to vector<16x128xbf16>
    %c48 = arith.constant 48 : index
    %c0_11 = arith.constant 0 : index
    %20 = vector.load %arg3[%c48, %c0_11] : memref<112x40xf32, #tpu.memory_space<vmem>>, vector<4x16xf32>
    %21 = arith.truncf %20 : vector<4x16xf32> to vector<4x16xbf16>
    %c48_12 = arith.constant 48 : index
    %c32_13 = arith.constant 32 : index
    %22 = vector.load %arg3[%c48_12, %c32_13] : memref<112x40xf32, #tpu.memory_space<vmem>>, vector<4x1xf32>
    %cst_14 = arith.constant dense<0.000000e+00> : vector<4x128xf32>
    %23 = tpu.matmul %21, %19, %cst_14 {dimension_numbers = #tpu.dot_dimension_numbers<[1], [0], [0], [1], [0, 0, 1, 1], [], []>} : vector<4x16xbf16>, vector<16x128xbf16>, vector<4x128xf32> -> vector<4x128xf32>
    %24 = vector.broadcast %22 : vector<4x1xf32> to vector<4x128xf32>
    %25 = arith.addf %23, %24 : vector<4x128xf32>
    %26 = vector.extract_strided_slice %25 {offsets = [0, 0], sizes = [2, 128], strides = [1, 1]} : vector<4x128xf32> to vector<2x128xf32>
    %27 = vector.extract_strided_slice %25 {offsets = [2, 0], sizes = [2, 128], strides = [1, 1]} : vector<4x128xf32> to vector<2x128xf32>
    %c0_15 = arith.constant 0 : index
    %c0_16 = arith.constant 0 : index
    %28 = vector.load %arg2[%c0_15, %c0_16] : memref<2x128xf32, #tpu.memory_space<vmem>>, vector<2x128xf32>
    %cst_17 = arith.constant 5.000000e-01 : f32
    %29 = vector.broadcast %cst_17 : f32 to vector<2x128xf32>
    %30 = arith.mulf %29, %27 : vector<2x128xf32>
    %31 = math.exp %30 : vector<2x128xf32>
    %32 = arith.mulf %28, %31 : vector<2x128xf32>
    %33 = arith.addf %26, %32 : vector<2x128xf32>
    %34 = arith.truncf %33 : vector<2x128xf32> to vector<2x128xbf16>
    %c56 = arith.constant 56 : index
    %c0_18 = arith.constant 0 : index
    %35 = vector.load %arg3[%c56, %c0_18] : memref<112x40xf32, #tpu.memory_space<vmem>>, vector<16x2xf32>
    %36 = arith.truncf %35 : vector<16x2xf32> to vector<16x2xbf16>
    %c56_19 = arith.constant 56 : index
    %c32_20 = arith.constant 32 : index
    %37 = vector.load %arg3[%c56_19, %c32_20] : memref<112x40xf32, #tpu.memory_space<vmem>>, vector<16x1xf32>
    %cst_21 = arith.constant dense<0.000000e+00> : vector<16x128xf32>
    %38 = tpu.matmul %36, %34, %cst_21 {dimension_numbers = #tpu.dot_dimension_numbers<[1], [0], [0], [1], [0, 0, 1, 1], [], []>} : vector<16x2xbf16>, vector<2x128xbf16>, vector<16x128xf32> -> vector<16x128xf32>
    %39 = vector.broadcast %37 : vector<16x1xf32> to vector<16x128xf32>
    %40 = arith.addf %38, %39 : vector<16x128xf32>
    %cst_22 = arith.constant 0.000000e+00 : f32
    %41 = vector.broadcast %cst_22 : f32 to vector<16x128xf32>
    %42 = arith.maximumf %40, %41 : vector<16x128xf32>
    %43 = arith.truncf %42 : vector<16x128xf32> to vector<16x128xbf16>
    %c72 = arith.constant 72 : index
    %c0_23 = arith.constant 0 : index
    %44 = vector.load %arg3[%c72, %c0_23] : memref<112x40xf32, #tpu.memory_space<vmem>>, vector<32x16xf32>
    %45 = arith.truncf %44 : vector<32x16xf32> to vector<32x16xbf16>
    %c72_24 = arith.constant 72 : index
    %c32_25 = arith.constant 32 : index
    %46 = vector.load %arg3[%c72_24, %c32_25] : memref<112x40xf32, #tpu.memory_space<vmem>>, vector<32x1xf32>
    %cst_26 = arith.constant dense<0.000000e+00> : vector<32x128xf32>
    %47 = tpu.matmul %45, %43, %cst_26 {dimension_numbers = #tpu.dot_dimension_numbers<[1], [0], [0], [1], [0, 0, 1, 1], [], []>} : vector<32x16xbf16>, vector<16x128xbf16>, vector<32x128xf32> -> vector<32x128xf32>
    %48 = vector.broadcast %46 : vector<32x1xf32> to vector<32x128xf32>
    %49 = arith.addf %47, %48 : vector<32x128xf32>
    %cst_27 = arith.constant 0.000000e+00 : f32
    %50 = vector.broadcast %cst_27 : f32 to vector<32x128xf32>
    %51 = arith.maximumf %49, %50 : vector<32x128xf32>
    %52 = arith.truncf %51 : vector<32x128xf32> to vector<32x128xbf16>
    %c104 = arith.constant 104 : index
    %c0_28 = arith.constant 0 : index
    %53 = vector.load %arg3[%c104, %c0_28] : memref<112x40xf32, #tpu.memory_space<vmem>>, vector<5x32xf32>
    %54 = arith.truncf %53 : vector<5x32xf32> to vector<5x32xbf16>
    %c104_29 = arith.constant 104 : index
    %c32_30 = arith.constant 32 : index
    %55 = vector.load %arg3[%c104_29, %c32_30] : memref<112x40xf32, #tpu.memory_space<vmem>>, vector<5x1xf32>
    %cst_31 = arith.constant dense<0.000000e+00> : vector<5x128xf32>
    %56 = tpu.matmul %54, %52, %cst_31 {dimension_numbers = #tpu.dot_dimension_numbers<[1], [0], [0], [1], [0, 0, 1, 1], [], []>} : vector<5x32xbf16>, vector<32x128xbf16>, vector<5x128xf32> -> vector<5x128xf32>
    %57 = vector.broadcast %55 : vector<5x1xf32> to vector<5x128xf32>
    %58 = arith.addf %56, %57 : vector<5x128xf32>
    %c0_32 = arith.constant 0 : index
    %c0_33 = arith.constant 0 : index
    %59 = vector.load %arg4[%c0_32, %c0_33] : memref<5x128xf32, #tpu.memory_space<vmem>>, vector<5x128xf32>
    tpu.vector_store %arg4[%c0_32, %c0_33], %58 {strides = array<i32>} : memref<5x128xf32, #tpu.memory_space<vmem>>, vector<5x128xf32>,
    %c0_34 = arith.constant 0 : index
    %c0_35 = arith.constant 0 : index
    %60 = vector.load %arg5[%c0_34, %c0_35] : memref<2x128xf32, #tpu.memory_space<vmem>>, vector<2x128xf32>
    tpu.vector_store %arg5[%c0_34, %c0_35], %26 {strides = array<i32>} : memref<2x128xf32, #tpu.memory_space<vmem>>, vector<2x128xf32>,
    %c0_36 = arith.constant 0 : index
    %c0_37 = arith.constant 0 : index
    %61 = vector.load %arg6[%c0_36, %c0_37] : memref<2x128xf32, #tpu.memory_space<vmem>>, vector<2x128xf32>
    tpu.vector_store %arg6[%c0_36, %c0_37], %27 {strides = array<i32>} : memref<2x128xf32, #tpu.memory_space<vmem>>, vector<2x128xf32>,
    return
  }
  func.func @transform_0(%arg0: i32) -> (i32, i32) {
    %c0_i32 = arith.constant 0 : i32
    %c0_i32_0 = arith.constant 0 : i32
    return %c0_i32, %arg0 : i32, i32
  }
  func.func @transform_1(%arg0: i32) -> (i32, i32) {
    %c0_i32 = arith.constant 0 : i32
    %c0_i32_0 = arith.constant 0 : i32
    return %c0_i32, %arg0 : i32, i32
  }
  func.func @transform_2(%arg0: i32) -> (i32, i32) {
    %c0_i32 = arith.constant 0 : i32
    %c0_i32_0 = arith.constant 0 : i32
    %c0_i32_1 = arith.constant 0 : i32
    return %c0_i32, %c0_i32_0 : i32, i32
  }
  func.func @transform_3(%arg0: i32) -> (i32, i32) {
    %c0_i32 = arith.constant 0 : i32
    %c0_i32_0 = arith.constant 0 : i32
    return %c0_i32, %arg0 : i32, i32
  }
  func.func @transform_4(%arg0: i32) -> (i32, i32) {
    %c0_i32 = arith.constant 0 : i32
    %c0_i32_0 = arith.constant 0 : i32
    return %c0_i32, %arg0 : i32, i32
  }
  func.func @transform_5(%arg0: i32) -> (i32, i32) {
    %c0_i32 = arith.constant 0 : i32
    %c0_i32_0 = arith.constant 0 : i32
    return %c0_i32, %arg0 : i32, i32
  }
}

</mosaic_0001>

<llo_original>
// kernel: vae_forward_t.1
$region0: #{vae_forward_t.1}
  #allocation0 [shape = 'u32[]', space=smem, size = 0x4, offset = 0x4, fixed_abs, tag = 'smem constant byte address 0x4 - core index']
  #allocation1 [shape = 'u32[144,128]{1,0:T(1,128)}', space=vmem, size = 0x12000, scoped, tag = 'internal scratch']
  %s0 = inlined_call_operand.vmem [shape: f32[5,128], index: 0, kind: input, shape index: {}]
  %s1 = inlined_call_operand.vmem [shape: f32[2,128], index: 1, kind: input, shape index: {}]
  %s2 = inlined_call_operand.vmem [shape: f32[112,40], index: 2, kind: input, shape index: {}]
  %s3 = inlined_call_operand.hbm [shape: f32[5,128], index: 3, kind: output, shape index: {0}]
  %s4 = inlined_call_operand.hbm [shape: f32[2,128], index: 4, kind: output, shape index: {1}]
  %s5 = inlined_call_operand.hbm [shape: f32[2,128], index: 5, kind: output, shape index: {2}]
  %6 = xla_tuple %s3, %s4, %s5
  %s7 = sld [smem:[#allocation0]]
  $region38: #{vae_forward_t.1} parent=0
    _
  %s9 = ssub.s32 1, %s7
  %s10 = scalar_select 0, %s9, %s7
  $region1: #{vae_forward_t.1} parent=0
    #allocation2 [shape = 'u8[4096]{0}', space=vmem, size = 0x1000, scoped, tag = 'output window, operand 0, single buffered']
    #allocation3 [shape = 's32[1]{0}', space=sflag, size = 0x4, scoped, tag = 'scoped memory for vae_forward_t.1']
    #allocation4 [shape = 'u8[1024]{0}', space=vmem, size = 0x400, scoped, tag = 'output window, operand 1, single buffered']
    #allocation5 [shape = 's32[1]{0}', space=sflag, size = 0x4, scoped, tag = 'scoped memory for vae_forward_t.1']
    #allocation6 [shape = 'u8[1024]{0}', space=vmem, size = 0x400, scoped, tag = 'output window, operand 2, single buffered']
    %11 = vsyncpa [#allocation3], 0
    %12 = vsyncpa [#allocation5], 0
    // Predicated region
    $region2: #{vae_forward_t.1} parent=1 // pred_check
      _
    $region3: #{vae_forward_t.1} parent=1 // pred_check_branch
      %14 = sbr.rel (0) target = $region5
    $region4: #{vae_forward_t.1} parent=1 // pred_region
      _
    $region5: #{vae_forward_t.1} parent=1 // pred_fallthru
      _
    // Predicated region
    $region6: #{vae_forward_t.1} parent=1 // pred_check
      _
    $region7: #{vae_forward_t.1} parent=1 // pred_check_branch
      %16 = sbr.rel (0) target = $region9
    $region8: #{vae_forward_t.1} parent=1 // pred_region
      _
    $region9: #{vae_forward_t.1} parent=1 // pred_fallthru
      _
    // Predicated region
    $region10: #{vae_forward_t.1} parent=1 // pred_check
      _
    $region11: #{vae_forward_t.1} parent=1 // pred_check_branch
      %18 = sbr.rel (0) target = $region13
    $region12: #{vae_forward_t.1} parent=1 // pred_region
      _
    $region13: #{vae_forward_t.1} parent=1 // pred_fallthru
      _
    %v20 = vld [vmem:[%s0] sm:$0x1f]
    %v21 = vpack.c.bf16 %v20, %v20
    %v22 = vld [vmem:[%s2] sm:$0xff]
    %v23 = vld [vmem:[%s2 + $0x8] sm:$0xff]
    %v24 = vld [vmem:[%s2 + $0x10] sm:$0xff]
    %v25 = vld [vmem:[%s2 + $0x18] sm:$0xff]
    %v26 = vpack.c.bf16 %v23, %v22
    %v27 = vpack.c.bf16 %v25, %v24
    %29 = vset.pattern.permute.xlu0 32
    %30 = vperm.xlu0 %29, %v22
    %v31 = vpop.permute.xlu0 %30
    %34 = vset.pattern.permute.xlu0 32
    %35 = vperm.xlu0 %34, %v23
    %v36 = vpop.permute.xlu0 %35
    %39 = vset.pattern.permute.xlu0 32
    %40 = vperm.xlu0 %39, %v24
    %v41 = vpop.permute.xlu0 %40
    %44 = vset.pattern.permute.xlu0 32
    %45 = vperm.xlu0 %44, %v25
    %v46 = vpop.permute.xlu0 %45
    %vm48 = vcmask 39936
    %v50 = vsel %vm48, %v26, 0
    %v53 = vsel %vm48, %v27, 0
    %vm55 = vcmask 1041408
    %vm56 = vcmask 1042432
    %v57 = vsel %vm55, 4294967295, 65535
    %v58 = vsel %vm56, %v57, 0
    %v60 = vand.u32 %v21, %v58
    %62 = vmatprep.subr.bf16.mxu0 0
    %63 = vmatpush1.bf16.msra.mxu0 %v60
    %64 = vmatprep.subr.bf16.mxu0 0
    %65 = vmatpush1.bf16.msra.mxu0 0
    %66 = vmatprep.subr.bf16.mxu0 0
    %67 = vmatpush1.bf16.msra.mxu0 0
    %68 = vmatprep.subr.bf16.mxu0 0
    %69 = vmatpush1.bf16.msra.mxu0 0
    %70 = vmatprep.subr.bf16.mxu0 0
    %71 = vmatpush1.bf16.msra.mxu0 0
    %72 = vmatprep.subr.bf16.mxu0 0
    %73 = vmatpush1.bf16.msra.mxu0 0
    %74 = vmatprep.subr.bf16.mxu0 0
    %75 = vmatpush1.bf16.msra.mxu0 0
    %76 = vmatprep.subr.bf16.mxu0 0
    %77 = vmatpush1.bf16.msra.mxu0 0
    %78 = vmatprep.subr.bf16.mxu0 0
    %79 = vmatpush1.bf16.msra.mxu0 0
    %80 = vmatprep.subr.bf16.mxu0 0
    %81 = vmatpush1.bf16.msra.mxu0 0
    %82 = vmatprep.subr.bf16.mxu0 0
    %83 = vmatpush1.bf16.msra.mxu0 0
    %84 = vmatprep.subr.bf16.mxu0 0
    %85 = vmatpush1.bf16.msra.mxu0 0
    %86 = vmatprep.subr.bf16.mxu0 0
    %87 = vmatpush1.bf16.msra.mxu0 0
    %88 = vmatprep.subr.bf16.mxu0 0
    %89 = vmatpush1.bf16.msra.mxu0 0
    %90 = vmatprep.subr.bf16.mxu0 0
    %91 = vmatpush1.bf16.msra.mxu0 0
    %92 = vmatprep.subr.bf16.mxu0 0
    %93 = vmatpush1.bf16.msra.mxu0 0
    %94 = vmatprep.mubr.bf16.mxu0 0
    %95 = vmatmul.mubr.bf16.gmra.mrb[0].mxu0 %v50
    %v96 = vpop.f32.mrb[0].mxu0
    %v97 = vadd.f32 %v31, %v96
    %v98 = vpop.f32.mrb[0].mxu0
    %v99 = vpop.f32.mrb[0].mxu0
    %v100 = vadd.f32 %v36, %v99
    %v101 = vpop.f32.mrb[0].mxu0
    %102 = vmatprep.mubr.bf16.mxu0 0
    %103 = vmatmul.mubr.bf16.gmra.mrb[0].mxu0 %v53
    %v104 = vpop.f32.mrb[0].mxu0
    %v105 = vadd.f32 %v41, %v104
    %v106 = vpop.f32.mrb[0].mxu0
    %v107 = vpop.f32.mrb[0].mxu0
    %v108 = vadd.f32 %v46, %v107
    %v109 = vpop.f32.mrb[0].mxu0
    %110 = vdwg.mxu0
    %v111 = vmax.f32 %v97, 0.0
    %v112 = vmax.f32 %v100, 0.0
    %v113 = vmax.f32 %v105, 0.0
    %v114 = vmax.f32 %v108, 0.0
    %v115 = vpack.c.bf16 %v112, %v111
    %v116 = vpack.c.bf16 %v114, %v113
    %v117 = vld [vmem:[%s2 + $0x20] sm:$0xff]
    %v118 = vld [vmem:[%s2 + $0x28] sm:$0xff]
    %v119 = vpack.c.bf16 %v118, %v117
    %121 = vset.pattern.permute.xlu0 32
    %122 = vperm.xlu0 %121, %v117
    %v123 = vpop.permute.xlu0 %122
    %126 = vset.pattern.permute.xlu0 32
    %127 = vperm.xlu0 %126, %v118
    %v128 = vpop.permute.xlu0 %127
    %vm130 = vcmask 261120
    %v132 = vsel %vm130, %v119, 0
    %134 = vmatprep.subr.bf16.mxu0 0
    %135 = vmatpush1.bf16.msra.mxu0 %v115
    %136 = vmatprep.subr.bf16.mxu0 0
    %137 = vmatpush1.bf16.msra.mxu0 %v116
    %138 = vmatprep.subr.bf16.mxu0 0
    %139 = vmatpush1.bf16.msra.mxu0 0
    %140 = vmatprep.subr.bf16.mxu0 0
    %141 = vmatpush1.bf16.msra.mxu0 0
    %142 = vmatprep.subr.bf16.mxu0 0
    %143 = vmatpush1.bf16.msra.mxu0 0
    %144 = vmatprep.subr.bf16.mxu0 0
    %145 = vmatpush1.bf16.msra.mxu0 0
    %146 = vmatprep.subr.bf16.mxu0 0
    %147 = vmatpush1.bf16.msra.mxu0 0
    %148 = vmatprep.subr.bf16.mxu0 0
    %149 = vmatpush1.bf16.msra.mxu0 0
    %150 = vmatprep.subr.bf16.mxu0 0
    %151 = vmatpush1.bf16.msra.mxu0 0
    %152 = vmatprep.subr.bf16.mxu0 0
    %153 = vmatpush1.bf16.msra.mxu0 0
    %154 = vmatprep.subr.bf16.mxu0 0
    %155 = vmatpush1.bf16.msra.mxu0 0
    %156 = vmatprep.subr.bf16.mxu0 0
    %157 = vmatpush1.bf16.msra.mxu0 0
    %158 = vmatprep.subr.bf16.mxu0 0
    %159 = vmatpush1.bf16.msra.mxu0 0
    %160 = vmatprep.subr.bf16.mxu0 0
    %161 = vmatpush1.bf16.msra.mxu0 0
    %162 = vmatprep.subr.bf16.mxu0 0
    %163 = vmatpush1.bf16.msra.mxu0 0
    %164 = vmatprep.subr.bf16.mxu0 0
    %165 = vmatpush1.bf16.msra.mxu0 0
    %166 = vmatprep.mubr.bf16.mxu0 0
    %167 = vmatmul.mubr.bf16.gmra.mrb[0].mxu0 %v132
    %v168 = vpop.f32.mrb[0].mxu0
    %v169 = vadd.f32 %v123, %v168
    %v170 = vpop.f32.mrb[0].mxu0
    %v171 = vpop.f32.mrb[0].mxu0
    %v172 = vadd.f32 %v128, %v171
    %v173 = vpop.f32.mrb[0].mxu0
    %174 = vdwg.mxu0
    %v175 = vmax.f32 %v169, 0.0
    %v176 = vmax.f32 %v172, 0.0
    %v177 = vpack.c.bf16 %v176, %v175
    %v178 = vld [vmem:[%s2 + $0x30] sm:$0xf]
    %v179 = vpack.c.bf16 %v178, %v178
    %181 = vset.pattern.permute.xlu0 32
    %182 = vperm.xlu0 %181, %v178
    %v183 = vpop.permute.xlu0 %182
    %vm185 = vcmask 130048
    %v187 = vsel %vm185, %v179, 0
    %189 = vmatprep.subr.bf16.mxu0 0
    %190 = vmatpush1.bf16.msra.mxu0 %v177
    %191 = vmatprep.subr.bf16.mxu0 0
    %192 = vmatpush1.bf16.msra.mxu0 0
    %193 = vmatprep.subr.bf16.mxu0 0
    %194 = vmatpush1.bf16.msra.mxu0 0
    %195 = vmatprep.subr.bf16.mxu0 0
    %196 = vmatpush1.bf16.msra.mxu0 0
    %197 = vmatprep.subr.bf16.mxu0 0
    %198 = vmatpush1.bf16.msra.mxu0 0
    %199 = vmatprep.subr.bf16.mxu0 0
    %200 = vmatpush1.bf16.msra.mxu0 0
    %201 = vmatprep.subr.bf16.mxu0 0
    %202 = vmatpush1.bf16.msra.mxu0 0
    %203 = vmatprep.subr.bf16.mxu0 0
    %204 = vmatpush1.bf16.msra.mxu0 0
    %205 = vmatprep.subr.bf16.mxu0 0
    %206 = vmatpush1.bf16.msra.mxu0 0
    %207 = vmatprep.subr.bf16.mxu0 0
    %208 = vmatpush1.bf16.msra.mxu0 0
    %209 = vmatprep.subr.bf16.mxu0 0
    %210 = vmatpush1.bf16.msra.mxu0 0
    %211 = vmatprep.subr.bf16.mxu0 0
    %212 = vmatpush1.bf16.msra.mxu0 0
    %213 = vmatprep.subr.bf16.mxu0 0
    %214 = vmatpush1.bf16.msra.mxu0 0
    %215 = vmatprep.subr.bf16.mxu0 0
    %216 = vmatpush1.bf16.msra.mxu0 0
    %217 = vmatprep.subr.bf16.mxu0 0
    %218 = vmatpush1.bf16.msra.mxu0 0
    %219 = vmatprep.subr.bf16.mxu0 0
    %220 = vmatpush1.bf16.msra.mxu0 0
    %221 = vmatprep.mubr.bf16.mxu0 0
    %222 = vmatmul.mubr.bf16.gmra.mrb[0].mxu0 %v187
    %v223 = vpop.f32.mrb[0].mxu0
    %v224 = vadd.f32 %v183, %v223
    %v225 = vpop.f32.mrb[0].mxu0
    %v226 = vpop.f32.mrb[0].mxu0
    %v227 = vpop.f32.mrb[0].mxu0
    %228 = vdwg.mxu0
    %v229 = vld [vmem:[%s1] sm:$0x3]
    %v230 = vmul.f32 %v224, 0.5
    %v231 = vmul.f32 %v230, 1.442695
    %v232 = vpow.pop %v231
    %v234 = vrot.slane %v232, 2
    %v236 = vmul.f32 %v229, %v234
    %v237 = vadd.f32 %v224, %v236
    %v238 = vpack.c.bf16 %v237, %v237
    %v239 = vld [vmem:[%s2 + $0x38] sm:$0xff]
    %v240 = vld [vmem:[%s2 + $0x40] sm:$0xff]
    %v241 = vpack.c.bf16 %v240, %v239
    %243 = vset.pattern.permute.xlu0 32
    %244 = vperm.xlu0 %243, %v239
    %v245 = vpop.permute.xlu0 %244
    %248 = vset.pattern.permute.xlu0 32
    %249 = vperm.xlu0 %248, %v240
    %v250 = vpop.permute.xlu0 %249
    %vm252 = vcmask 15360
    %v254 = vsel %vm252, %v241, 0
    %vm256 = vcmask 1040384
    %v258 = vsel %vm256, %v238, 0
    %260 = vmatprep.subr.bf16.mxu0 0
    %261 = vmatpush1.bf16.msra.mxu0 %v258
    %262 = vmatprep.subr.bf16.mxu0 0
    %263 = vmatpush1.bf16.msra.mxu0 0
    %264 = vmatprep.subr.bf16.mxu0 0
    %265 = vmatpush1.bf16.msra.mxu0 0
    %266 = vmatprep.subr.bf16.mxu0 0
    %267 = vmatpush1.bf16.msra.mxu0 0
    %268 = vmatprep.subr.bf16.mxu0 0
    %269 = vmatpush1.bf16.msra.mxu0 0
    %270 = vmatprep.subr.bf16.mxu0 0
    %271 = vmatpush1.bf16.msra.mxu0 0
    %272 = vmatprep.subr.bf16.mxu0 0
    %273 = vmatpush1.bf16.msra.mxu0 0
    %274 = vmatprep.subr.bf16.mxu0 0
    %275 = vmatpush1.bf16.msra.mxu0 0
    %276 = vmatprep.subr.bf16.mxu0 0
    %277 = vmatpush1.bf16.msra.mxu0 0
    %278 = vmatprep.subr.bf16.mxu0 0
    %279 = vmatpush1.bf16.msra.mxu0 0
    %280 = vmatprep.subr.bf16.mxu0 0
    %281 = vmatpush1.bf16.msra.mxu0 0
    %282 = vmatprep.subr.bf16.mxu0 0
    %283 = vmatpush1.bf16.msra.mxu0 0
    %284 = vmatprep.subr.bf16.mxu0 0
    %285 = vmatpush1.bf16.msra.mxu0 0
    %286 = vmatprep.subr.bf16.mxu0 0
    %287 = vmatpush1.bf16.msra.mxu0 0
    %288 = vmatprep.subr.bf16.mxu0 0
    %289 = vmatpush1.bf16.msra.mxu0 0
    %290 = vmatprep.subr.bf16.mxu0 0
    %291 = vmatpush1.bf16.msra.mxu0 0
    %292 = vmatprep.mubr.bf16.mxu0 0
    %293 = vmatmul.mubr.bf16.gmra.mrb[0].mxu0 %v254
    %v294 = vpop.f32.mrb[0].mxu0
    %v295 = vadd.f32 %v245, %v294
    %v296 = vpop.f32.mrb[0].mxu0
    %v297 = vpop.f32.mrb[0].mxu0
    %v298 = vadd.f32 %v250, %v297
    %v299 = vpop.f32.mrb[0].mxu0
    %300 = vdwg.mxu0
    %v301 = vmax.f32 %v295, 0.0
    %v302 = vmax.f32 %v298, 0.0
    %v303 = vpack.c.bf16 %v302, %v301
    %v304 = vld [vmem:[%s2 + $0x48] sm:$0xff]
    %v305 = vld [vmem:[%s2 + $0x50] sm:$0xff]
    %v306 = vld [vmem:[%s2 + $0x58] sm:$0xff]
    %v307 = vld [vmem:[%s2 + $0x60] sm:$0xff]
    %v308 = vpack.c.bf16 %v305, %v304
    %v309 = vpack.c.bf16 %v307, %v306
    %311 = vset.pattern.permute.xlu0 32
    %312 = vperm.xlu0 %311, %v304
    %v313 = vpop.permute.xlu0 %312
    %316 = vset.pattern.permute.xlu0 32
    %317 = vperm.xlu0 %316, %v305
    %v318 = vpop.permute.xlu0 %317
    %321 = vset.pattern.permute.xlu0 32
    %322 = vperm.xlu0 %321, %v306
    %v323 = vpop.permute.xlu0 %322
    %326 = vset.pattern.permute.xlu0 32
    %327 = vperm.xlu0 %326, %v307
    %v328 = vpop.permute.xlu0 %327
    %v331 = vsel %vm185, %v308, 0
    %v334 = vsel %vm185, %v309, 0
    %336 = vmatprep.subr.bf16.mxu0 0
    %337 = vmatpush1.bf16.msra.mxu0 %v303
    %338 = vmatprep.subr.bf16.mxu0 0
    %339 = vmatpush1.bf16.msra.mxu0 0
    %340 = vmatprep.subr.bf16.mxu0 0
    %341 = vmatpush1.bf16.msra.mxu0 0
    %342 = vmatprep.subr.bf16.mxu0 0
    %343 = vmatpush1.bf16.msra.mxu0 0
    %344 = vmatprep.subr.bf16.mxu0 0
    %345 = vmatpush1.bf16.msra.mxu0 0
    %346 = vmatprep.subr.bf16.mxu0 0
    %347 = vmatpush1.bf16.msra.mxu0 0
    %348 = vmatprep.subr.bf16.mxu0 0
    %349 = vmatpush1.bf16.msra.mxu0 0
    %350 = vmatprep.subr.bf16.mxu0 0
    %351 = vmatpush1.bf16.msra.mxu0 0
    %352 = vmatprep.subr.bf16.mxu0 0
    %353 = vmatpush1.bf16.msra.mxu0 0
    %354 = vmatprep.subr.bf16.mxu0 0
    %355 = vmatpush1.bf16.msra.mxu0 0
    %356 = vmatprep.subr.bf16.mxu0 0
    %357 = vmatpush1.bf16.msra.mxu0 0
    %358 = vmatprep.subr.bf16.mxu0 0
    %359 = vmatpush1.bf16.msra.mxu0 0
    %360 = vmatprep.subr.bf16.mxu0 0
    %361 = vmatpush1.bf16.msra.mxu0 0
    %362 = vmatprep.subr.bf16.mxu0 0
    %363 = vmatpush1.bf16.msra.mxu0 0
    %364 = vmatprep.subr.bf16.mxu0 0
    %365 = vmatpush1.bf16.msra.mxu0 0
    %366 = vmatprep.subr.bf16.mxu0 0
    %367 = vmatpush1.bf16.msra.mxu0 0
    %368 = vmatprep.mubr.bf16.mxu0 0
    %369 = vmatmul.mubr.bf16.gmra.mrb[0].mxu0 %v331
    %v370 = vpop.f32.mrb[0].mxu0
    %v371 = vadd.f32 %v313, %v370
    %v372 = vpop.f32.mrb[0].mxu0
    %v373 = vpop.f32.mrb[0].mxu0
    %v374 = vadd.f32 %v318, %v373
    %v375 = vpop.f32.mrb[0].mxu0
    %376 = vmatprep.mubr.bf16.mxu0 0
    %377 = vmatmul.mubr.bf16.gmra.mrb[0].mxu0 %v334
    %v378 = vpop.f32.mrb[0].mxu0
    %v379 = vadd.f32 %v323, %v378
    %v380 = vpop.f32.mrb[0].mxu0
    %v381 = vpop.f32.mrb[0].mxu0
    %v382 = vadd.f32 %v328, %v381
    %v383 = vpop.f32.mrb[0].mxu0
    %384 = vdwg.mxu0
    %v385 = vmax.f32 %v371, 0.0
    %v386 = vmax.f32 %v374, 0.0
    %v387 = vmax.f32 %v379, 0.0
    %v388 = vmax.f32 %v382, 0.0
    %v389 = vpack.c.bf16 %v386, %v385
    %v390 = vpack.c.bf16 %v388, %v387
    %v391 = vld [vmem:[%s2 + $0x68] sm:$0x1f]
    %v392 = vpack.c.bf16 %v391, %v391
    %394 = vset.pattern.permute.xlu0 32
    %395 = vperm.xlu0 %394, %v391
    %v396 = vpop.permute.xlu0 %395
    %v399 = vsel %vm130, %v392, 0
    %401 = vmatprep.subr.bf16.mxu0 0
    %402 = vmatpush1.bf16.msra.mxu0 %v389
    %403 = vmatprep.subr.bf16.mxu0 0
    %404 = vmatpush1.bf16.msra.mxu0 %v390
    %405 = vmatprep.subr.bf16.mxu0 0
    %406 = vmatpush1.bf16.msra.mxu0 0
    %407 = vmatprep.subr.bf16.mxu0 0
    %408 = vmatpush1.bf16.msra.mxu0 0
    %409 = vmatprep.subr.bf16.mxu0 0
    %410 = vmatpush1.bf16.msra.mxu0 0
    %411 = vmatprep.subr.bf16.mxu0 0
    %412 = vmatpush1.bf16.msra.mxu0 0
    %413 = vmatprep.subr.bf16.mxu0 0
    %414 = vmatpush1.bf16.msra.mxu0 0
    %415 = vmatprep.subr.bf16.mxu0 0
    %416 = vmatpush1.bf16.msra.mxu0 0
    %417 = vmatprep.subr.bf16.mxu0 0
    %418 = vmatpush1.bf16.msra.mxu0 0
    %419 = vmatprep.subr.bf16.mxu0 0
    %420 = vmatpush1.bf16.msra.mxu0 0
    %421 = vmatprep.subr.bf16.mxu0 0
    %422 = vmatpush1.bf16.msra.mxu0 0
    %423 = vmatprep.subr.bf16.mxu0 0
    %424 = vmatpush1.bf16.msra.mxu0 0
    %425 = vmatprep.subr.bf16.mxu0 0
    %426 = vmatpush1.bf16.msra.mxu0 0
    %427 = vmatprep.subr.bf16.mxu0 0
    %428 = vmatpush1.bf16.msra.mxu0 0
    %429 = vmatprep.subr.bf16.mxu0 0
    %430 = vmatpush1.bf16.msra.mxu0 0
    %431 = vmatprep.subr.bf16.mxu0 0
    %432 = vmatpush1.bf16.msra.mxu0 0
    %433 = vmatprep.mubr.bf16.mxu0 0
    %434 = vmatmul.mubr.bf16.gmra.mrb[0].mxu0 %v399
    %v435 = vpop.f32.mrb[0].mxu0
    %v436 = vadd.f32 %v396, %v435
    %v437 = vpop.f32.mrb[0].mxu0
    %v438 = vpop.f32.mrb[0].mxu0
    %v439 = vpop.f32.mrb[0].mxu0
    %440 = vdwg.mxu0
    %441 = vst [vmem:[#allocation2] sm:$0x1f] %v436
    %442 = vst [vmem:[#allocation4] sm:$0x3] %v224
    %443 = vst [vmem:[#allocation6 - $0x2] sm:$0xc] %v224
    // Predicated region
    $region14: #{vae_forward_t.1} parent=1 // pred_check
      _
    $region15: #{vae_forward_t.1} parent=1 // pred_check_branch
      %445 = sbr.rel (0) target = $region17
    $region16: #{vae_forward_t.1} parent=1 // pred_region
      %s447 = ssub.s32 128, 128
      %448 = vsyncadd [#allocation3], %s447
      %s450 = sshll.u32 [#allocation2], 4
      %s451 = int_to_ptr.vmem [resolvable:$true] %s450
      %453 = dma.vmem_to_hbm [thread:$0]  %s451, 128, %s3, [#allocation3]
    $region17: #{vae_forward_t.1} parent=1 // pred_fallthru
      _
    // Predicated region
    $region18: #{vae_forward_t.1} parent=1 // pred_check
      _
    $region19: #{vae_forward_t.1} parent=1 // pred_check_branch
      %455 = sbr.rel (0) target = $region21
    $region20: #{vae_forward_t.1} parent=1 // pred_region
      %s457 = ssub.s32 32, 32
      %458 = vsyncadd [#allocation5], %s457
      %s460 = sshll.u32 [#allocation4], 4
      %s461 = int_to_ptr.vmem [resolvable:$true] %s460
      %463 = dma.vmem_to_hbm [thread:$0]  %s461, 32, %s4, [#allocation5]
    $region21: #{vae_forward_t.1} parent=1 // pred_fallthru
      _
    // Predicated region
    $region22: #{vae_forward_t.1} parent=1 // pred_check
      _
    $region23: #{vae_forward_t.1} parent=1 // pred_check_branch
      %465 = sbr.rel (0) target = $region25
    $region24: #{vae_forward_t.1} parent=1 // pred_region
      %s467 = ssub.s32 32, 32
      %468 = vsyncadd [#allocation5], %s467
      %s470 = sshll.u32 [#allocation6], 4
      %s471 = int_to_ptr.vmem [resolvable:$true] %s470
      %473 = dma.vmem_to_hbm [thread:$0]  %s471, 32, %s5, [#allocation5]
    $region25: #{vae_forward_t.1} parent=1 // pred_fallthru
      _
    // Predicated region
    $region26: #{vae_forward_t.1} parent=1 // pred_check
      _
    $region27: #{vae_forward_t.1} parent=1 // pred_check_branch
      %475 = sbr.rel (0) target = $region29
    $region28: #{vae_forward_t.1} parent=1 // pred_region
      %476 = dma.done [#allocation3], 128
    $region29: #{vae_forward_t.1} parent=1 // pred_fallthru
      _
    // Predicated region
    $region30: #{vae_forward_t.1} parent=1 // pred_check
      _
    $region31: #{vae_forward_t.1} parent=1 // pred_check_branch
      %478 = sbr.rel (0) target = $region33
    $region32: #{vae_forward_t.1} parent=1 // pred_region
      %479 = dma.done [#allocation5], 32
    $region33: #{vae_forward_t.1} parent=1 // pred_fallthru
      _
    // Predicated region
    $region34: #{vae_forward_t.1} parent=1 // pred_check
      _
    $region35: #{vae_forward_t.1} parent=1 // pred_check_branch
      %481 = sbr.rel (0) target = $region37
    $region36: #{vae_forward_t.1} parent=1 // pred_region
      %482 = dma.done [#allocation5], 32
    $region37: #{vae_forward_t.1} parent=1 // pred_fallthru
      _
    %483 = vsyncpa [#allocation3], 1
    %484 = vsyncpa [#allocation5], 1

</llo_original>
